<compile_context>
chip_gen: v6e
topology: v6e:2x2x1
jax: 0.10.0
libtpu: 0.0.40
codegen_flags: <defaults>
</compile_context>

<pallas_src>
import functools
import random as pyrandom

import jax
import jax.numpy as jnp
from jax.experimental import pallas as pl
from jax.experimental.pallas import tpu as pltpu


# ----------------------------- Pallas kernel --------------------------------
def _conv_drop_kernel(scale_ref, p_ref, w_ref, b_ref, o_ref):
    # scale_ref : SMEM (1,)              -- 1/keep_prob (keep) or 1.0 (eval)
    # p_ref     : VMEM (N, KK*Cin, HW)   -- im2col patches, HW lane-dense
    # w_ref     : VMEM (Cout, KK*Cin)    -- conv weights, tap-major / channel-minor
    # b_ref     : VMEM (Cout, 1)         -- bias
    # o_ref     : VMEM (N, Cout, HW)     -- NCHW-flat output, HW lane-dense
    scale = scale_ref[0]
    wm = w_ref[...]          # (Cout, KKC)
    bias = b_ref[...]        # (Cout, 1) -> broadcasts over HW
    n = o_ref.shape[0]
    for i in range(n):       # static unrolled; N is tiny and fits one grid step
        acc = jnp.dot(wm, p_ref[i], preferred_element_type=jnp.float32)  # (Cout, HW)
        o_ref[i] = ((acc + bias) * scale).astype(o_ref.dtype)


# ------------------------------- wrapper -------------------------------------
@functools.partial(jax.jit, static_argnames=("kh", "kw"))
def _conv_drop_pallas(x_nchw, w2, b2, scale, kh=3, kw=3):
    """x_nchw: [N, Cin, H, W] f32; w2: [Cout, KH*KW*Cin]; b2: [Cout, 1]; scale: [1]."""
    n, cin, h, w = x_nchw.shape
    cout = w2.shape[0]
    kkc = kh * kw * cin
    hw = h * w

    # ---- glue: pad + im2col with taps fused into the contraction dim ----
    ph, pw = kh // 2, kw // 2
    x_pad = jnp.pad(x_nchw, ((0, 0), (0, 0), (ph, ph), (pw, pw)))
    taps = []
    for i in range(kh):
        for j in range(kw):
            taps.append(x_pad[:, :, i:i + h, j:j + w].reshape(n, cin, hw))
    # [N, KK, Cin, HW] -> [N, KK*Cin, HW]  (flat index = k*Cin + cin, matches w2)
    p = jnp.stack(taps, axis=1).reshape(n, kkc, hw)

    flops = 2 * n * cout * kkc * hw
    bytes_accessed = 4 * (p.size + w2.size + b2.size + n * cout * hw)

    out = pl.pallas_call(
        _conv_drop_kernel,
        out_shape=jax.ShapeDtypeStruct((n, cout, hw), jnp.float32),
        grid_spec=pltpu.PrefetchScalarGridSpec(
            num_scalar_prefetch=1,               # `scale` lands in SMEM
            grid=(1,),                           # whole (tiny) problem in one step
            in_specs=[
                pl.BlockSpec((n, kkc, hw), lambda i, s: (0, 0, 0)),
                pl.BlockSpec((cout, kkc), lambda i, s: (0, 0)),
                pl.BlockSpec((cout, 1), lambda i, s: (0, 0)),
            ],
            out_specs=pl.BlockSpec((n, cout, hw), lambda i, s: (0, 0, 0)),
        ),
        compiler_params=pltpu.CompilerParams(
            dimension_semantics=("arbitrary",)
        ),
        cost_estimate=pl.CostEstimate(
            flops=flops, transcendentals=0, bytes_accessed=bytes_accessed
        ),
    )(scale, p, w2, b2)

    # [N, Cout, H*W] is already NCHW-flat: pure reshape, no transpose
    return out.reshape(n, cout, h, w)


# --------------------------- DropModule wrapper -------------------------------
class DropModuleControl:
    def __init__(self, keep_prob=0.9):
        self.keep_prob = keep_prob
        self.status = False

    def enable(self):
        self.status = True


class DropModulePallas:
    """Mirrors DropModule.forward; the wrapped module is the Pallas conv kernel."""

    def __init__(self, w_torch, bias, drop_control: DropModuleControl, rng_seed=0):
        cout, cin, kh, kw = w_torch.shape
        # [Cout, Cin, KH, KW] -> [Cout, KH*KW*Cin]  (tap-major, channel-minor)
        self.w2 = jnp.transpose(w_torch, (0, 2, 3, 1)).reshape(cout, kh * kw * cin)
        self.b2 = bias.reshape(cout, 1)
        self.cout, self.kh, self.kw = cout, kh, kw
        self.drop_control = drop_control
        self.training = True
        self.shape = None
        # host-side Bernoulli draw, deterministic stand-in for Python random()
        self._rng = pyrandom.Random(rng_seed)

    def __call__(self, x):
        n, _, h, w = x.shape
        if self.training and self.drop_control.status:
            if self.shape is None:
                # 'same'-padded conv: output shape is known analytically -- no probe launch
                self.shape = (n, self.cout, h, w)
            if self._rng.random() <= self.drop_control.keep_prob:
                scale = jnp.full((1,), 1.0 / self.drop_control.keep_prob, jnp.float32)
                return _conv_drop_pallas(x, self.w2, self.b2, scale,
                                         kh=self.kh, kw=self.kw)
            # dropped: skip the conv entirely (exact zeros; no kernel launch, no 0*inf NaN)
            return jnp.zeros((n, *self.shape[1:]), jnp.float32)
        scale = jnp.ones((1,), jnp.float32)
        return _conv_drop_pallas(x, self.w2, self.b2, scale, kh=self.kh, kw=self.kw)


# -------------------------------- main ---------------------------------------
if __name__ == "__main__":
    N, CIN, H, W = 2, 4, 16, 16
    COUT, KH, KW = 8, 3, 3

    key = jax.random.PRNGKey(0)
    kx, kw_, kb = jax.random.split(key, 3)

    x = jax.random.normal(kx, (N, CIN, H, W), jnp.float32)
    # "Conv2d" params in PyTorch layout [Cout, Cin, KH, KW]
    w_torch = jax.random.normal(kw_, (COUT, CIN, KH, KW), jnp.float32) * 0.1
    bias = jax.random.normal(kb, (COUT,), jnp.float32) * 0.1

    # ---- eval path (plain module output) + correctness check vs XLA conv ----
    ctrl = DropModuleControl(keep_prob=0.9)
    ctrl.enable()
    mod = DropModulePallas(w_torch, bias, ctrl, rng_seed=0)
    mod.training = False
    out_eval = mod(x)
    jax.block_until_ready(out_eval)
    assert out_eval.shape == (N, COUT, H, W), out_eval.shape

    ref = jax.lax.conv_general_dilated(
        x, w_torch, window_strides=(1, 1), padding="SAME",
        dimension_numbers=("NCHW", "OIHW", "NCHW"),
    ) + bias[None, :, None, None]
    assert jnp.allclose(out_eval, ref, atol=1e-4, rtol=1e-4), "conv mismatch"

    # ---- training + drop enabled: keep branch (Random(0) first draw ~0.844 <= 0.9) ----
    mod.training = True
    out_keep = mod(x)
    jax.block_until_ready(out_keep)
    assert out_keep.shape == (N, COUT, H, W)
    assert jnp.allclose(out_keep * ctrl.keep_prob, out_eval, atol=1e-4, rtol=1e-4)

    # ---- training + drop enabled: drop branch (keep_prob=0.5 < first draw) -> zeros ----
    ctrl2 = DropModuleControl(keep_prob=0.5)
    ctrl2.enable()
    mod2 = DropModulePallas(w_torch, bias, ctrl2, rng_seed=0)
    mod2.training = True
    out_drop = mod2(x)
    jax.block_until_ready(out_drop)
    assert out_drop.shape == (N, COUT, H, W)
    assert float(jnp.abs(out_drop).max()) == 0.0

    print("KERNEL_OK")
</pallas_src>

<mosaic_0001>
module attributes {stable_mosaic.version = 11 : i64} {
  func.func @_conv_drop_kernel(%arg0: i32, %arg1: memref<1xf32, #tpu.memory_space<smem>>, %arg2: memref<2x36x256xf32, #tpu.memory_space<vmem>>, %arg3: memref<8x36xf32, #tpu.memory_space<vmem>>, %arg4: memref<8x1xf32, #tpu.memory_space<vmem>>, %arg5: memref<2x8x256xf32, #tpu.memory_space<vmem>>) attributes {dimension_semantics = [#tpu.dimension_semantics<arbitrary>], iteration_bounds = array<i64: 1>, scalar_prefetch = 1 : i64, scratch_operands = 0 : i64, tpu.core_type = #tpu.core_type<tc>, window_params = [{pipeline_mode = #tpu.pipeline_mode<synchronous>, transform_indices = @transform_0, window_bounds = array<i64: 2, 36, 256>}, {pipeline_mode = #tpu.pipeline_mode<synchronous>, transform_indices = @transform_1, window_bounds = array<i64: 8, 36>}, {pipeline_mode = #tpu.pipeline_mode<synchronous>, transform_indices = @transform_2, window_bounds = array<i64: 8, 1>}, {pipeline_mode = #tpu.pipeline_mode<synchronous>, transform_indices = @transform_3, window_bounds = array<i64: 2, 8, 256>}]} {
    %c0 = arith.constant 0 : index
    %0 = memref.load %arg1[%c0] : memref<1xf32, #tpu.memory_space<smem>>
    %c0_0 = arith.constant 0 : index
    %c0_1 = arith.constant 0 : index
    %1 = vector.load %arg3[%c0_0, %c0_1] : memref<8x36xf32, #tpu.memory_space<vmem>>, vector<8x36xf32>
    %c0_2 = arith.constant 0 : index
    %c0_3 = arith.constant 0 : index
    %2 = vector.load %arg4[%c0_2, %c0_3] : memref<8x1xf32, #tpu.memory_space<vmem>>, vector<8x1xf32>
    %c0_4 = arith.constant 0 : index
    %c0_5 = arith.constant 0 : index
    %c0_6 = arith.constant 0 : index
    %3 = vector.load %arg2[%c0_4, %c0_5, %c0_6] : memref<2x36x256xf32, #tpu.memory_space<vmem>>, vector<1x36x256xf32>
    %4 = vector.shape_cast %3 : vector<1x36x256xf32> to vector<36x256xf32>
    %cst = arith.constant dense<0.000000e+00> : vector<8x256xf32>
    %5 = tpu.matmul %1, %4, %cst {dimension_numbers = #tpu.dot_dimension_numbers<[1], [0], [0], [1], [0, 0, 1, 1], [], []>} : vector<8x36xf32>, vector<36x256xf32>, vector<8x256xf32> -> vector<8x256xf32>
    %6 = vector.broadcast %2 : vector<8x1xf32> to vector<8x256xf32>
    %7 = arith.addf %5, %6 : vector<8x256xf32>
    %8 = vector.broadcast %0 : f32 to vector<8x256xf32>
    %9 = arith.mulf %7, %8 : vector<8x256xf32>
    %c0_7 = arith.constant 0 : index
    %c0_8 = arith.constant 0 : index
    %c0_9 = arith.constant 0 : index
    %10 = vector.load %arg5[%c0_7, %c0_8, %c0_9] : memref<2x8x256xf32, #tpu.memory_space<vmem>>, vector<1x8x256xf32>
    %11 = vector.shape_cast %10 : vector<1x8x256xf32> to vector<8x256xf32>
    %12 = vector.shape_cast %9 : vector<8x256xf32> to vector<1x8x256xf32>
    tpu.vector_store %arg5[%c0_7, %c0_8, %c0_9], %12 {strides = array<i32>} : memref<2x8x256xf32, #tpu.memory_space<vmem>>, vector<1x8x256xf32>,
    %c1 = arith.constant 1 : index
    %c0_10 = arith.constant 0 : index
    %c0_11 = arith.constant 0 : index
    %13 = vector.load %arg2[%c1, %c0_10, %c0_11] : memref<2x36x256xf32, #tpu.memory_space<vmem>>, vector<1x36x256xf32>
    %14 = vector.shape_cast %13 : vector<1x36x256xf32> to vector<36x256xf32>
    %cst_12 = arith.constant dense<0.000000e+00> : vector<8x256xf32>
    %15 = tpu.matmul %1, %14, %cst_12 {dimension_numbers = #tpu.dot_dimension_numbers<[1], [0], [0], [1], [0, 0, 1, 1], [], []>} : vector<8x36xf32>, vector<36x256xf32>, vector<8x256xf32> -> vector<8x256xf32>
    %16 = vector.broadcast %2 : vector<8x1xf32> to vector<8x256xf32>
    %17 = arith.addf %15, %16 : vector<8x256xf32>
    %18 = vector.broadcast %0 : f32 to vector<8x256xf32>
    %19 = arith.mulf %17, %18 : vector<8x256xf32>
    %c1_13 = arith.constant 1 : index
    %c0_14 = arith.constant 0 : index
    %c0_15 = arith.constant 0 : index
    %20 = vector.load %arg5[%c1_13, %c0_14, %c0_15] : memref<2x8x256xf32, #tpu.memory_space<vmem>>, vector<1x8x256xf32>
    %21 = vector.shape_cast %20 : vector<1x8x256xf32> to vector<8x256xf32>
    %22 = vector.shape_cast %19 : vector<8x256xf32> to vector<1x8x256xf32>
    tpu.vector_store %arg5[%c1_13, %c0_14, %c0_15], %22 {strides = array<i32>} : memref<2x8x256xf32, #tpu.memory_space<vmem>>, vector<1x8x256xf32>,
    return
  }
  func.func @transform_0(%arg0: i32, %arg1: memref<1xf32, #tpu.memory_space<smem>>) -> (i32, i32, i32) {
    %c0_i32 = arith.constant 0 : i32
    %c0_i32_0 = arith.constant 0 : i32
    %c0_i32_1 = arith.constant 0 : i32
    %c0_i32_2 = arith.constant 0 : i32
    return %c0_i32, %c0_i32_0, %c0_i32_1 : i32, i32, i32
  }
  func.func @transform_1(%arg0: i32, %arg1: memref<1xf32, #tpu.memory_space<smem>>) -> (i32, i32) {
    %c0_i32 = arith.constant 0 : i32
    %c0_i32_0 = arith.constant 0 : i32
    %c0_i32_1 = arith.constant 0 : i32
    return %c0_i32, %c0_i32_0 : i32, i32
  }
  func.func @transform_2(%arg0: i32, %arg1: memref<1xf32, #tpu.memory_space<smem>>) -> (i32, i32) {
    %c0_i32 = arith.constant 0 : i32
    %c0_i32_0 = arith.constant 0 : i32
    %c0_i32_1 = arith.constant 0 : i32
    return %c0_i32, %c0_i32_0 : i32, i32
  }
  func.func @transform_3(%arg0: i32, %arg1: memref<1xf32, #tpu.memory_space<smem>>) -> (i32, i32, i32) {
    %c0_i32 = arith.constant 0 : i32
    %c0_i32_0 = arith.constant 0 : i32
    %c0_i32_1 = arith.constant 0 : i32
    %c0_i32_2 = arith.constant 0 : i32
    return %c0_i32, %c0_i32_0, %c0_i32_1 : i32, i32, i32
  }
}

</mosaic_0001>

<llo_original>
// kernel: _conv_drop_pallas.1
$region0: #{_conv_drop_pallas.1}
  #allocation0 [shape = 'u32[]', space=smem, size = 0x4, offset = 0x4, fixed_abs, tag = 'smem constant byte address 0x4 - core index']
  #allocation1 [shape = 'u32[144,128]{1,0:T(1,128)}', space=vmem, size = 0x12000, scoped, tag = 'internal scratch']
  #allocation2 [shape = 's32[1]{0}', space=sflag, size = 0x4, scoped, tag = 'scoped memory for _conv_drop_pallas.1']
  #allocation3 [shape = 'f32[1]{0:T(128)S(6)}', space=smem, size = 0x200, scoped, tag = 'prefetched SMEM operand 0']
  %s0 = inlined_call_operand.<no memory space> [shape: f32[1], index: 0, kind: input, shape index: {}]
  %s1 = inlined_call_operand.vmem [shape: f32[2,36,256], index: 1, kind: input, shape index: {}]
  %s2 = inlined_call_operand.vmem [shape: f32[8,36], index: 2, kind: input, shape index: {}]
  %s3 = inlined_call_operand.vmem [shape: f32[8,1], index: 3, kind: input, shape index: {}]
  %s4 = inlined_call_operand.vmem [shape: f32[2,8,256], index: 4, kind: output, shape index: {}]
  %s5 = sld [smem:[#allocation0]]
  $region22: #{_conv_drop_pallas.1} parent=0
    _
  %s7 = ssub.s32 1, %s5
  %s8 = scalar_select 0, %s7, %s5
  %9 = sst [smem:[#allocation3]] %s0
  // Predicated region
  $region2: #{_conv_drop_pallas.1} parent=0 // pred_check
    _
  $region3: #{_conv_drop_pallas.1} parent=0 // pred_check_branch
    %11 = sbr.rel (0) target = $region5
  $region4: #{_conv_drop_pallas.1} parent=0 // pred_region
    _
  $region5: #{_conv_drop_pallas.1} parent=0 // pred_fallthru
    _
  // Predicated region
  $region6: #{_conv_drop_pallas.1} parent=0 // pred_check
    _
  $region7: #{_conv_drop_pallas.1} parent=0 // pred_check_branch
    %13 = sbr.rel (0) target = $region9
  $region8: #{_conv_drop_pallas.1} parent=0 // pred_region
    _
  $region9: #{_conv_drop_pallas.1} parent=0 // pred_fallthru
    _
  // Predicated region
  $region10: #{_conv_drop_pallas.1} parent=0 // pred_check
    _
  $region11: #{_conv_drop_pallas.1} parent=0 // pred_check_branch
    %15 = sbr.rel (0) target = $region13
  $region12: #{_conv_drop_pallas.1} parent=0 // pred_region
    _
  $region13: #{_conv_drop_pallas.1} parent=0 // pred_fallthru
    _
  %s16 = sld [smem:[#allocation3]]
  %v17 = vld [vmem:[%s2] sm:$0xff]
  %v18 = vld [vmem:[%s3] sm:$0xff]
  %v19 = vld [vmem:[%s1] sm:$0xff]
  %v20 = vld [vmem:[%s1 + $0x8] sm:$0xff]
  %v21 = vld [vmem:[%s1 + $0x10] sm:$0xff]
  %v22 = vld [vmem:[%s1 + $0x18] sm:$0xff]
  %v23 = vld [vmem:[%s1 + $0x20] sm:$0xff]
  %v24 = vld [vmem:[%s1 + $0x28] sm:$0xff]
  %v25 = vld [vmem:[%s1 + $0x30] sm:$0xff]
  %v26 = vld [vmem:[%s1 + $0x38] sm:$0xff]
  %v27 = vld [vmem:[%s1 + $0x40] sm:$0xf]
  %v28 = vld [vmem:[%s1 + $0x48] sm:$0xf]
  %30 = vset.pattern.permute.xlu0 0
  %31 = vperm.xlu0 %30, %v18
  %v32 = vpop.permute.xlu0 %31
  %vm34 = vcmask 293888
  %v36 = vsel %vm34, %v17, 0
  %vm38 = vcmask 1043456
  %v40 = vsel %vm38, %v27, 0
  %v43 = vsel %vm38, %v28, 0
  %45 = vmatprep.subr.mxu0 0.0
  %46 = vmatpush1.msra.mxu0 0.0
  %47 = vmatprep.subr.mxu0 0.0
  %48 = vmatpush1.msra.mxu0 0.0
  %49 = vmatprep.subr.mxu0 0.0
  %50 = vmatpush1.msra.mxu0 0.0
  %51 = vmatprep.subr.mxu0 0.0
  %52 = vmatpush1.msra.mxu0 0.0
  %53 = vmatprep.subr.mxu0 0.0
  %54 = vmatpush1.msra.mxu0 0.0
  %55 = vmatprep.subr.mxu0 0.0
  %56 = vmatpush1.msra.mxu0 0.0
  %57 = vmatprep.subr.mxu0 0.0
  %58 = vmatpush1.msra.mxu0 0.0
  %59 = vmatprep.subr.mxu0 0.0
  %60 = vmatpush1.msra.mxu0 0.0
  %61 = vmatprep.subr.mxu0 0.0
  %62 = vmatpush1.msra.mxu0 0.0
  %63 = vmatprep.subr.mxu0 0.0
  %64 = vmatpush1.msra.mxu0 0.0
  %65 = vmatprep.subr.mxu0 0.0
  %66 = vmatpush1.msra.mxu0 0.0
  %67 = vmatprep.subr.mxu0 %v43
  %68 = vmatpush1.msra.mxu0 %v40
  %69 = vmatprep.subr.mxu0 %v26
  %70 = vmatpush1.msra.mxu0 %v25
  %71 = vmatprep.subr.mxu0 %v24
  %72 = vmatpush1.msra.mxu0 %v23
  %73 = vmatprep.subr.mxu0 %v22
  %74 = vmatpush1.msra.mxu0 %v21
  %75 = vmatprep.subr.mxu0 %v20
  %76 = vmatpush1.msra.mxu0 %v19
  %77 = vmatprep.subr.mxu0 0.0
  %78 = vmatpush2.msra.mxu0 0.0
  %79 = vmatprep.subr.mxu0 0.0
  %80 = vmatpush2.msra.mxu0 0.0
  %81 = vmatprep.subr.mxu0 0.0
  %82 = vmatpush2.msra.mxu0 0.0
  %83 = vmatprep.subr.mxu0 0.0
  %84 = vmatpush2.msra.mxu0 0.0
  %85 = vmatprep.subr.mxu0 0.0
  %86 = vmatpush2.msra.mxu0 0.0
  %87 = vmatprep.subr.mxu0 0.0
  %88 = vmatpush2.msra.mxu0 0.0
  %89 = vmatprep.subr.mxu0 0.0
  %90 = vmatpush2.msra.mxu0 0.0
  %91 = vmatprep.subr.mxu0 0.0
  %92 = vmatpush2.msra.mxu0 0.0
  %93 = vmatprep.subr.mxu0 0.0
  %94 = vmatpush2.msra.mxu0 0.0
  %95 = vmatprep.subr.mxu0 0.0
  %96 = vmatpush2.msra.mxu0 0.0
  %97 = vmatprep.subr.mxu0 0.0
  %98 = vmatpush2.msra.mxu0 0.0
  %99 = vmatprep.subr.mxu0 0.0
  %100 = vmatpush2.msra.mxu0 0.0
  %101 = vmatprep.subr.mxu0 0.0
  %102 = vmatpush2.msra.mxu0 0.0
  %103 = vmatprep.subr.mxu0 0.0
  %104 = vmatpush2.msra.mxu0 0.0
  %105 = vmatprep.subr.mxu0 0.0
  %106 = vmatpush2.msra.mxu0 0.0
  %107 = vmatprep.subr.mxu0 0.0
  %108 = vmatpush2.msra.mxu0 0.0
  %109 = vmatprep.mubr.f32.mxu0 0.0
  %110 = vmatmul.mubr.f32.gmra.mxu0 %v36
  %v111 = vpop.f32.mrf.mxu0
  %v112 = vadd.f32 %v32, %v111
  %v113 = vpop.f32.mrf.mxu0
  %v114 = vadd.f32 %v32, %v113
  %115 = vdwg.mxu0
  %v116 = vstv %s16
  %v117 = vmul.f32 %v112, %v116
  %v118 = vmul.f32 %v114, %v116
  %119 = vst [vmem:[%s4] sm:$0xff] %v117
  %120 = vst [vmem:[%s4 + $0x8] sm:$0xff] %v118
  %s121 = scalar_lea.vmem %s1, 80
  %v122 = vld [vmem:[%s121] sm:$0xff]
  %v123 = vld [vmem:[%s121 + $0x8] sm:$0xff]
  %v124 = vld [vmem:[%s121 + $0x10] sm:$0xff]
  %v125 = vld [vmem:[%s121 + $0x18] sm:$0xff]
  %v126 = vld [vmem:[%s121 + $0x20] sm:$0xff]
  %v127 = vld [vmem:[%s121 + $0x28] sm:$0xff]
  %v128 = vld [vmem:[%s121 + $0x30] sm:$0xff]
  %v129 = vld [vmem:[%s121 + $0x38] sm:$0xff]
  %v130 = vld [vmem:[%s121 + $0x40] sm:$0xf]
  %v131 = vld [vmem:[%s121 + $0x48] sm:$0xf]
  %v133 = vsel %vm38, %v130, 0
  %v136 = vsel %vm38, %v131, 0
  %138 = vmatprep.subr.mxu0 0.0
  %139 = vmatpush1.msra.mxu0 0.0
  %140 = vmatprep.subr.mxu0 0.0
  %141 = vmatpush1.msra.mxu0 0.0
  %142 = vmatprep.subr.mxu0 0.0
  %143 = vmatpush1.msra.mxu0 0.0
  %144 = vmatprep.subr.mxu0 0.0
  %145 = vmatpush1.msra.mxu0 0.0
  %146 = vmatprep.subr.mxu0 0.0
  %147 = vmatpush1.msra.mxu0 0.0
  %148 = vmatprep.subr.mxu0 0.0
  %149 = vmatpush1.msra.mxu0 0.0
  %150 = vmatprep.subr.mxu0 0.0
  %151 = vmatpush1.msra.mxu0 0.0
  %152 = vmatprep.subr.mxu0 0.0
  %153 = vmatpush1.msra.mxu0 0.0
  %154 = vmatprep.subr.mxu0 0.0
  %155 = vmatpush1.msra.mxu0 0.0
  %156 = vmatprep.subr.mxu0 0.0
  %157 = vmatpush1.msra.mxu0 0.0
  %158 = vmatprep.subr.mxu0 0.0
  %159 = vmatpush1.msra.mxu0 0.0
  %160 = vmatprep.subr.mxu0 %v136
  %161 = vmatpush1.msra.mxu0 %v133
  %162 = vmatprep.subr.mxu0 %v129
  %163 = vmatpush1.msra.mxu0 %v128
  %164 = vmatprep.subr.mxu0 %v127
  %165 = vmatpush1.msra.mxu0 %v126
  %166 = vmatprep.subr.mxu0 %v125
  %167 = vmatpush1.msra.mxu0 %v124
  %168 = vmatprep.subr.mxu0 %v123
  %169 = vmatpush1.msra.mxu0 %v122
  %170 = vmatprep.subr.mxu0 0.0
  %171 = vmatpush2.msra.mxu0 0.0
  %172 = vmatprep.subr.mxu0 0.0
  %173 = vmatpush2.msra.mxu0 0.0
  %174 = vmatprep.subr.mxu0 0.0
  %175 = vmatpush2.msra.mxu0 0.0
  %176 = vmatprep.subr.mxu0 0.0
  %177 = vmatpush2.msra.mxu0 0.0
  %178 = vmatprep.subr.mxu0 0.0
  %179 = vmatpush2.msra.mxu0 0.0
  %180 = vmatprep.subr.mxu0 0.0
  %181 = vmatpush2.msra.mxu0 0.0
  %182 = vmatprep.subr.mxu0 0.0
  %183 = vmatpush2.msra.mxu0 0.0
  %184 = vmatprep.subr.mxu0 0.0
  %185 = vmatpush2.msra.mxu0 0.0
  %186 = vmatprep.subr.mxu0 0.0
  %187 = vmatpush2.msra.mxu0 0.0
  %188 = vmatprep.subr.mxu0 0.0
  %189 = vmatpush2.msra.mxu0 0.0
  %190 = vmatprep.subr.mxu0 0.0
  %191 = vmatpush2.msra.mxu0 0.0
  %192 = vmatprep.subr.mxu0 0.0
  %193 = vmatpush2.msra.mxu0 0.0
  %194 = vmatprep.subr.mxu0 0.0
  %195 = vmatpush2.msra.mxu0 0.0
  %196 = vmatprep.subr.mxu0 0.0
  %197 = vmatpush2.msra.mxu0 0.0
  %198 = vmatprep.subr.mxu0 0.0
  %199 = vmatpush2.msra.mxu0 0.0
  %200 = vmatprep.subr.mxu0 0.0
  %201 = vmatpush2.msra.mxu0 0.0
  %202 = vmatprep.mubr.f32.mxu0 0.0
  %203 = vmatmul.mubr.f32.gmra.mxu0 %v36
  %v204 = vpop.f32.mrf.mxu0
  %v205 = vadd.f32 %v32, %v204
  %v206 = vpop.f32.mrf.mxu0
  %v207 = vadd.f32 %v32, %v206
  %208 = vdwg.mxu0
  %v209 = vmul.f32 %v205, %v116
  %v210 = vmul.f32 %v207, %v116
  %s211 = scalar_lea.vmem %s4, 16
  %212 = vst [vmem:[%s211] sm:$0xff] %v209
  %213 = vst [vmem:[%s211 + $0x8] sm:$0xff] %v210
  // Predicated region
  $region14: #{_conv_drop_pallas.1} parent=0 // pred_check
    _
  $region15: #{_conv_drop_pallas.1} parent=0 // pred_check_branch
    %215 = sbr.rel (0) target = $region17
  $region16: #{_conv_drop_pallas.1} parent=0 // pred_region
    _
  $region17: #{_conv_drop_pallas.1} parent=0 // pred_fallthru
    _
  // Predicated region
  $region18: #{_conv_drop_pallas.1} parent=0 // pred_check
    _
  $region19: #{_conv_drop_pallas.1} parent=0 // pred_check_branch
    %217 = sbr.rel (0) target = $region21
  $region20: #{_conv_drop_pallas.1} parent=0 // pred_region
    _
  $region21: #{_conv_drop_pallas.1} parent=0 // pred_fallthru
    _

</llo_original>
